<compile_context>
chip_gen: v5e
topology: v5e:2x2
jax: 0.10.0
libtpu: 0.0.40
codegen_flags: <defaults>
</compile_context>

<pallas_src>
import functools

import jax
import jax.numpy as jnp
from jax import lax
from jax.experimental import pallas as pl
from jax.experimental.pallas import tpu as pltpu

_NEG_BIG = -1e30  # finite "minus infinity" used to mask padded class columns


def _round_up(x, m):
    return ((x + m - 1) // m) * m


def _choose_tiles(n, c, itemsize, max_tile_n=None, max_tile_c=None):
    """Shape/chip-aware tile selection + scoped-VMEM limit to request."""
    try:
        vmem_cap = int(pltpu.get_tpu_info().vmem_capacity_bytes)
    except Exception:
        vmem_cap = 64 * 1024 * 1024   # conservative fallback (v7x per-TC VMEM)
    vmem_limit = (vmem_cap * 3) // 4  # headroom below physical capacity

    # Class tile: one full-C block when small enough, otherwise lane-dense
    # 128-multiple chunks + online log-sum-exp over the class grid axis.
    cap_c = 2048 if max_tile_c is None else max(128, _round_up(max_tile_c, 128))
    tile_c = c if c <= cap_c else cap_c

    # Batch tile: biggest aligned multiple whose double-buffered logits block
    # uses at most ~1/3 of the scoped limit (headroom for targets/scratch).
    align = 8 if itemsize >= 4 else (16 if itemsize == 2 else 32)
    logits_budget = vmem_limit // 3
    tile_n = logits_budget // (2 * max(tile_c, 128) * itemsize)
    tile_n = max(align, min(2048, (tile_n // align) * align))
    if max_tile_n is not None:
        tile_n = min(tile_n, max(align, _round_up(max_tile_n, align)))
    tile_n = min(tile_n, _round_up(n, align))
    return tile_n, tile_c, vmem_limit


def _focal_loss_kernel(logits_ref, tgt_ref, out_ref, acc_ref, *lse_scratch,
                       n_total, c_total, gamma, tile_n, tile_c,
                       num_class_tiles, needs_row_mask, needs_col_mask):
    i = pl.program_id(0)            # batch-tile index
    j = pl.program_id(1)            # class-tile index (reduction, last axis)

    @pl.when((i == 0) & (j == 0))
    def _():
        acc_ref[...] = jnp.zeros_like(acc_ref)

    x = logits_ref[...].astype(jnp.float32)            # (tile_n, tile_c)
    tgt = tgt_ref[...]                                 # (tile_n, 1) int32
    col = j * tile_c + lax.broadcasted_iota(jnp.int32, x.shape, 1)
    if needs_col_mask:                                 # static guard
        x = jnp.where(col < c_total, x, _NEG_BIG)
    # Logit at the target class via iota compare (no dynamic gather on TPU).
    t_chunk = jnp.sum(jnp.where(col == tgt, x, 0.0), axis=-1, keepdims=True)

    def _accumulate_ce(ce):                            # (tile_n, 1)
        if needs_row_mask:                             # static guard
            row = i * tile_n + lax.broadcasted_iota(jnp.int32, ce.shape, 0)
            ce = jnp.where(row < n_total, ce, 0.0)     # mask padded rows
        acc_ref[...] += ce

    if num_class_tiles == 1:
        # Whole class axis in one tile: direct log-sum-exp, no scratch carries.
        m = jnp.max(x, axis=-1, keepdims=True)
        lse = m + jnp.log(jnp.sum(jnp.exp(x - m), axis=-1, keepdims=True))
        _accumulate_ce(lse - t_chunk)
    else:
        m_ref, s_ref, t_ref = lse_scratch

        @pl.when(j == 0)
        def _():
            m_ref[...] = jnp.full_like(m_ref, -jnp.inf)
            s_ref[...] = jnp.zeros_like(s_ref)
            t_ref[...] = jnp.zeros_like(t_ref)

        # Online (streaming) log-sum-exp over class chunks.
        m_old = m_ref[...]
        m_new = jnp.maximum(m_old, jnp.max(x, axis=-1, keepdims=True))
        alpha = jnp.exp(m_old - m_new)
        s_ref[...] = alpha * s_ref[...] + jnp.sum(jnp.exp(x - m_new),
                                                  axis=-1, keepdims=True)
        m_ref[...] = m_new
        t_ref[...] += t_chunk

        @pl.when(j == num_class_tiles - 1)
        def _():
            _accumulate_ce(m_ref[...] + jnp.log(s_ref[...]) - t_ref[...])

    # Very last grid step: mean CE + focal modulation, single scalar write.
    @pl.when((i == pl.num_programs(0) - 1) & (j == num_class_tiles - 1))
    def _():
        total = jnp.sum(acc_ref[...], keepdims=True)            # (1, 1)
        logp = total * jnp.float32(1.0 / n_total)
        p = jnp.exp(-logp)
        one_minus_p = jnp.maximum(1.0 - p, 0.0)
        g = float(gamma)
        if g.is_integer() and 0.0 <= g <= 16.0:
            w = jnp.ones_like(one_minus_p)
            for _ in range(int(g)):                             # no pow lowering
                w = w * one_minus_p
        else:
            w = one_minus_p ** jnp.float32(g)
        out_ref[...] = w * logp


def focal_loss(logits, targets, gamma, *, max_tile_n=None, max_tile_c=None):
    """logits: (N, C) float32/bfloat16; targets: (N,) int. Returns scalar f32."""
    n, c = logits.shape
    itemsize = jnp.dtype(logits.dtype).itemsize
    tile_n, tile_c, vmem_limit = _choose_tiles(
        n, c, itemsize, max_tile_n=max_tile_n, max_tile_c=max_tile_c)
    grid_n = pl.cdiv(n, tile_n)
    grid_c = pl.cdiv(c, tile_c)

    tgt2d = targets.astype(jnp.int32).reshape(n, 1)

    kernel = functools.partial(
        _focal_loss_kernel, n_total=n, c_total=c, gamma=float(gamma),
        tile_n=tile_n, tile_c=tile_c, num_class_tiles=grid_c,
        needs_row_mask=(n % tile_n != 0), needs_col_mask=(c % tile_c != 0))

    scratch = [pltpu.VMEM((tile_n, 1), jnp.float32)]            # CE accumulator
    if grid_c > 1:                                              # online-LSE carries
        scratch += [pltpu.VMEM((tile_n, 1), jnp.float32)] * 3

    out = pl.pallas_call(
        kernel,
        out_shape=jax.ShapeDtypeStruct((1, 1), jnp.float32),
        grid_spec=pltpu.PrefetchScalarGridSpec(
            num_scalar_prefetch=0,
            grid=(grid_n, grid_c),
            in_specs=[
                pl.BlockSpec((tile_n, tile_c), lambda i, j: (i, j)),
                pl.BlockSpec((tile_n, 1), lambda i, j: (i, 0)),
            ],
            out_specs=pl.BlockSpec((1, 1), lambda i, j: (0, 0)),
            scratch_shapes=scratch,
        ),
        compiler_params=pltpu.CompilerParams(
            dimension_semantics=("arbitrary", "arbitrary"),
            vmem_limit_bytes=int(vmem_limit),
        ),
        cost_estimate=pl.CostEstimate(
            flops=6 * n * c,
            transcendentals=n * c,
            bytes_accessed=n * c * itemsize + n * 4 + 4),
    )(logits, tgt2d)
    return out[0, 0]


if __name__ == "__main__":
    key = jax.random.PRNGKey(0)
    k1, k2, k3, k4, k5, k6 = jax.random.split(key, 6)

    GAMMA = 2.0

    def ref_focal(lg, tg, gamma):
        lg = lg.astype(jnp.float32)
        lse = jax.nn.logsumexp(lg, axis=-1)
        tl = jnp.take_along_axis(lg, tg.astype(jnp.int32)[:, None], axis=-1)[:, 0]
        logp = jnp.mean(lse - tl)
        p = jnp.exp(-logp)
        return ((1.0 - p) ** gamma) * logp

    # Case 1: small aligned shapes, default tiling, single class tile (fast path).
    N, C = 16, 32
    logits = jax.random.normal(k1, (N, C), dtype=jnp.float32)
    targets = jax.random.randint(k2, (N,), 0, C, dtype=jnp.int32)
    out = jax.block_until_ready(focal_loss(logits, targets, GAMMA))
    ref = ref_focal(logits, targets, GAMMA)
    assert jnp.allclose(out, ref, rtol=1e-5, atol=1e-5), (out, ref)

    # Case 2: ragged N and C with forced small tiles -> multi-tile (batch x class)
    # grid, online LSE, class-edge and batch-edge masking (no wrapper padding).
    N2, C2 = 13, 200
    logits2 = jax.random.normal(k3, (N2, C2), dtype=jnp.float32)
    targets2 = jax.random.randint(k4, (N2,), 0, C2, dtype=jnp.int32)
    out2 = jax.block_until_ready(
        focal_loss(logits2, targets2, GAMMA, max_tile_n=8, max_tile_c=128))
    ref2 = ref_focal(logits2, targets2, GAMMA)
    assert jnp.allclose(out2, ref2, rtol=1e-5, atol=1e-5), (out2, ref2)

    # Case 3: ragged N with a single class tile (row masking on the fast path).
    N3, C3 = 13, 32
    logits3 = jax.random.normal(k5, (N3, C3), dtype=jnp.float32)
    targets3 = jax.random.randint(k6, (N3,), 0, C3, dtype=jnp.int32)
    out3 = jax.block_until_ready(focal_loss(logits3, targets3, GAMMA))
    ref3 = ref_focal(logits3, targets3, GAMMA)
    assert jnp.allclose(out3, ref3, rtol=1e-5, atol=1e-5), (out3, ref3)

    # Case 4: bf16 logits (halved HBM traffic; f32 math in-kernel).
    out4 = jax.block_until_ready(
        focal_loss(logits.astype(jnp.bfloat16), targets, GAMMA))
    ref4 = ref_focal(logits.astype(jnp.bfloat16), targets, GAMMA)
    assert jnp.allclose(out4, ref4, rtol=2e-2, atol=2e-2), (out4, ref4)

    print("KERNEL_OK")
</pallas_src>

<mosaic_0001>
module attributes {stable_mosaic.version = 11 : i64} {
  func.func @_focal_loss_kernel(%arg0: i32, %arg1: i32, %arg2: memref<16x32xf32, #tpu.memory_space<vmem>>, %arg3: memref<16x1xi32, #tpu.memory_space<vmem>>, %arg4: memref<1x1xf32, #tpu.memory_space<vmem>>, %arg5: memref<16x1xf32, #tpu.memory_space<vmem>>) attributes {dimension_semantics = [#tpu.dimension_semantics<arbitrary>, #tpu.dimension_semantics<arbitrary>], iteration_bounds = array<i64: 1, 1>, scalar_prefetch = 0 : i64, scratch_operands = 1 : i64, tpu.core_type = #tpu.core_type<tc>, window_params = [{transform_indices = @transform_0, window_bounds = array<i64: 16, 32>}, {transform_indices = @transform_1, window_bounds = array<i64: 16, 1>}, {pipeline_mode = #tpu.pipeline_mode<synchronous>, transform_indices = @transform_2, window_bounds = array<i64: 1, 1>}]} {
    %c0_i32 = arith.constant 0 : i32
    %0 = arith.cmpi eq, %arg0, %c0_i32 : i32
    %c0_i32_0 = arith.constant 0 : i32
    %1 = arith.cmpi eq, %arg1, %c0_i32_0 : i32
    %2 = arith.andi %0, %1 : i1
    %3 = arith.extui %2 : i1 to i32
    %c0_i32_1 = arith.constant 0 : i32
    %4 = arith.cmpi ne, %3, %c0_i32_1 : i32
    scf.if %4 {
      %cst_15 = arith.constant 0.000000e+00 : f32
      %35 = vector.broadcast %cst_15 : f32 to vector<16x1xf32>
      %c0_16 = arith.constant 0 : index
      %c0_17 = arith.constant 0 : index
      %36 = vector.load %arg5[%c0_16, %c0_17] : memref<16x1xf32, #tpu.memory_space<vmem>>, vector<16x1xf32>
      tpu.vector_store %arg5[%c0_16, %c0_17], %35 {strides = array<i32>} : memref<16x1xf32, #tpu.memory_space<vmem>>, vector<16x1xf32>,
    } else {
    }
    %c0 = arith.constant 0 : index
    %c0_2 = arith.constant 0 : index
    %5 = vector.load %arg2[%c0, %c0_2] : memref<16x32xf32, #tpu.memory_space<vmem>>, vector<16x32xf32>
    %c0_3 = arith.constant 0 : index
    %c0_4 = arith.constant 0 : index
    %6 = vector.load %arg3[%c0_3, %c0_4] : memref<16x1xi32, #tpu.memory_space<vmem>>, vector<16x1xi32>
    %c32_i32 = arith.constant 32 : i32
    %7 = arith.muli %arg1, %c32_i32 : i32
    %8 = tpu.iota {dimensions = array<i32: 1>} : vector<16x32xi32>
    %9 = vector.broadcast %7 : i32 to vector<16x32xi32>
    %10 = arith.addi %9, %8 : vector<16x32xi32>
    %11 = vector.broadcast %6 : vector<16x1xi32> to vector<16x32xi32>
    %12 = arith.cmpi eq, %10, %11 : vector<16x32xi32>
    %cst = arith.constant 0.000000e+00 : f32
    %13 = vector.broadcast %cst : f32 to vector<16x32xf32>
    %14 = arith.select %12, %5, %13 : vector<16x32xi1>, vector<16x32xf32>
    %cst_5 = arith.constant dense<0.000000e+00> : vector<16xf32>
    %15 = vector.multi_reduction <add>, %14, %cst_5 [1] : vector<16x32xf32> to vector<16xf32>
    %16 = vector.shape_cast %15 : vector<16xf32> to vector<16x1xf32>
    %cst_6 = arith.constant dense<0xFF800000> : vector<16xf32>
    %17 = vector.multi_reduction <maximumf>, %5, %cst_6 [1] : vector<16x32xf32> to vector<16xf32>
    %18 = vector.shape_cast %17 : vector<16xf32> to vector<16x1xf32>
    %19 = vector.broadcast %18 : vector<16x1xf32> to vector<16x32xf32>
    %20 = arith.subf %5, %19 : vector<16x32xf32>
    %21 = math.exp %20 : vector<16x32xf32>
    %cst_7 = arith.constant dense<0.000000e+00> : vector<16xf32>
    %22 = vector.multi_reduction <add>, %21, %cst_7 [1] : vector<16x32xf32> to vector<16xf32>
    %23 = vector.shape_cast %22 : vector<16xf32> to vector<16x1xf32>
    %24 = math.log %23 : vector<16x1xf32>
    %25 = arith.addf %18, %24 : vector<16x1xf32>
    %26 = arith.subf %25, %16 : vector<16x1xf32>
    %c0_8 = arith.constant 0 : index
    %c0_9 = arith.constant 0 : index
    %27 = vector.load %arg5[%c0_8, %c0_9] : memref<16x1xf32, #tpu.memory_space<vmem>>, vector<16x1xf32>
    %28 = arith.addf %27, %26 : vector<16x1xf32>
    %c0_10 = arith.constant 0 : index
    %c0_11 = arith.constant 0 : index
    %29 = vector.load %arg5[%c0_10, %c0_11] : memref<16x1xf32, #tpu.memory_space<vmem>>, vector<16x1xf32>
    tpu.vector_store %arg5[%c0_10, %c0_11], %28 {strides = array<i32>} : memref<16x1xf32, #tpu.memory_space<vmem>>, vector<16x1xf32>,
    %c0_i32_12 = arith.constant 0 : i32
    %30 = arith.cmpi eq, %arg0, %c0_i32_12 : i32
    %c0_i32_13 = arith.constant 0 : i32
    %31 = arith.cmpi eq, %arg1, %c0_i32_13 : i32
    %32 = arith.andi %30, %31 : i1
    %33 = arith.extui %32 : i1 to i32
    %c0_i32_14 = arith.constant 0 : i32
    %34 = arith.cmpi ne, %33, %c0_i32_14 : i32
    scf.if %34 {
      %c0_15 = arith.constant 0 : index
      %c0_16 = arith.constant 0 : index
      %35 = vector.load %arg5[%c0_15, %c0_16] : memref<16x1xf32, #tpu.memory_space<vmem>>, vector<16x1xf32>
      %36 = vector.shape_cast %35 : vector<16x1xf32> to vector<1x16x1xf32>
      %cst_17 = arith.constant dense<0.000000e+00> : vector<1xf32>
      %37 = vector.multi_reduction <add>, %36, %cst_17 [1, 2] : vector<1x16x1xf32> to vector<1xf32>
      %38 = vector.shape_cast %37 : vector<1xf32> to vector<1x1x1xf32>
      %39 = vector.extract %38[0, 0, 0] : f32 from vector<1x1x1xf32>
      %40 = vector.broadcast %39 : f32 to vector<1x1xf32>
      %cst_18 = arith.constant 6.250000e-02 : f32
      %41 = vector.broadcast %cst_18 : f32 to vector<1x1xf32>
      %42 = arith.mulf %40, %41 : vector<1x1xf32>
      %cst_19 = arith.constant 0.000000e+00 : f32
      %43 = vector.broadcast %cst_19 : f32 to vector<1x1xf32>
      %44 = arith.subf %43, %42 : vector<1x1xf32>
      %45 = math.exp %44 : vector<1x1xf32>
      %cst_20 = arith.constant 1.000000e+00 : f32
      %46 = vector.broadcast %cst_20 : f32 to vector<1x1xf32>
      %47 = arith.subf %46, %45 : vector<1x1xf32>
      %cst_21 = arith.constant 0.000000e+00 : f32
      %48 = vector.broadcast %cst_21 : f32 to vector<1x1xf32>
      %49 = arith.maximumf %47, %48 : vector<1x1xf32>
      %cst_22 = arith.constant 1.000000e+00 : f32
      %50 = vector.broadcast %cst_22 : f32 to vector<1x1xf32>
      %51 = arith.mulf %50, %49 : vector<1x1xf32>
      %52 = arith.mulf %51, %49 : vector<1x1xf32>
      %53 = arith.mulf %52, %42 : vector<1x1xf32>
      %c0_23 = arith.constant 0 : index
      %c0_24 = arith.constant 0 : index
      %54 = vector.load %arg4[%c0_23, %c0_24] : memref<1x1xf32, #tpu.memory_space<vmem>>, vector<1x1xf32>
      tpu.vector_store %arg4[%c0_23, %c0_24], %53 {strides = array<i32>} : memref<1x1xf32, #tpu.memory_space<vmem>>, vector<1x1xf32>,
    } else {
    }
    return
  }
  func.func @transform_0(%arg0: i32, %arg1: i32) -> (i32, i32) {
    %c0_i32 = arith.constant 0 : i32
    return %arg0, %arg1 : i32, i32
  }
  func.func @transform_1(%arg0: i32, %arg1: i32) -> (i32, i32) {
    %c0_i32 = arith.constant 0 : i32
    %c0_i32_0 = arith.constant 0 : i32
    return %arg0, %c0_i32 : i32, i32
  }
  func.func @transform_2(%arg0: i32, %arg1: i32) -> (i32, i32) {
    %c0_i32 = arith.constant 0 : i32
    %c0_i32_0 = arith.constant 0 : i32
    %c0_i32_1 = arith.constant 0 : i32
    return %c0_i32, %c0_i32_0 : i32, i32
  }
}

</mosaic_0001>

<llo_original>
// kernel: tpu_custom_call.1
$region0: #{tpu_custom_call.1}
  #allocation0 [shape = 'u32[]', space=smem, size = 0x4, offset = 0x4, fixed_abs, tag = 'smem constant byte address 0x4 - core index']
  #allocation1 [shape = 'u32[72,128]{1,0:T(1,128)}', space=vmem, size = 0x9000, scoped, tag = 'internal scratch']
  #allocation2 [shape = 'f32[16,1]{1,0:T(8,128)}', space=vmem, size = 0x2000, scoped, tag = 'scratch operand']
  %s0 = inlined_call_operand.vmem [shape: f32[16,32], index: 0, kind: input, shape index: {}]
  %s1 = inlined_call_operand.vmem [shape: s32[16,1], index: 1, kind: input, shape index: {}]
  %s2 = inlined_call_operand.hbm [shape: f32[1,1], index: 2, kind: output, shape index: {}]
  %s3 = sld [smem:[#allocation0]]
  $region26: #{tpu_custom_call.1} parent=0
    _
  %s5 = ssub.s32 1, %s3
  %s6 = scalar_select 0, %s5, %s3
  $region1: #{tpu_custom_call.1} parent=0
    #allocation3 [shape = 'u8[512]{0}', space=vmem, size = 0x400, scoped, tag = 'output window, operand 0, single buffered']
    #allocation4 [shape = 's32[1]{0}', space=sflag, size = 0x4, scoped, tag = 'scoped memory for tpu_custom_call.1']
    %7 = vsyncpa [#allocation4], 0
    // Predicated region
    $region2: #{tpu_custom_call.1} parent=1 // pred_check
      _
    $region3: #{tpu_custom_call.1} parent=1 // pred_check_branch
      %9 = sbr.rel (0) target = $region5
    $region4: #{tpu_custom_call.1} parent=1 // pred_region
      _
    $region5: #{tpu_custom_call.1} parent=1 // pred_fallthru
      _
    // Predicated region
    $region6: #{tpu_custom_call.1} parent=1 // pred_check
      _
    $region7: #{tpu_custom_call.1} parent=1 // pred_check_branch
      %11 = sbr.rel (0) target = $region9
    $region8: #{tpu_custom_call.1} parent=1 // pred_region
      _
    $region9: #{tpu_custom_call.1} parent=1 // pred_fallthru
      _
    %p12 = scmp.eq.s32.totalorder 0, 0
    %p13 = scmp.eq.s32.totalorder 0, 0
    %p14 = pnand %p12, %p13
    %p15 = pneg %p14
    // Predicated region
    $region10: #{tpu_custom_call.1} parent=1 // pred_check
      _
    $region11: #{tpu_custom_call.1} parent=1 // pred_check_branch
      %17 = sbr.rel (%p14) target = $region13
    $region12: #{tpu_custom_call.1} parent=1 // pred_region
      %vm18 = vcmask 7168
      %19 = vst.msk [vmem:[#allocation2] sm:$0xff] %vm18, 0.0
      %20 = vst.msk [vmem:[#allocation2 + $0x8] sm:$0xff] %vm18, 0.0
    $region13: #{tpu_custom_call.1} parent=1 // pred_fallthru
      _
    %v21 = vld [vmem:[%s0] sm:$0xff]
    %v22 = vld [vmem:[%s0 + $0x8] sm:$0xff]
    %v23 = vld [vmem:[%s1] sm:$0xff]
    %v24 = vld [vmem:[%s1 + $0x8] sm:$0xff]
    %s25 = smul.u32 0, 32
    %v26 = vlaneseq
    %v27 = vand.u32 %v26, 127
    %v28 = vstv %s25
    %v29 = vadd.s32 %v28, %v27
    %30 = vset.pattern.permute.xlu0 0
    %31 = vperm.xlu0 %30, %v23
    %v32 = vpop.permute.xlu0 %31
    %33 = vset.pattern.permute.xlu0 0
    %34 = vperm.xlu0 %33, %v24
    %v35 = vpop.permute.xlu0 %34
    %vm36 = vcmp.eq.s32.totalorder %v29, %v32
    %vm37 = vcmp.eq.s32.totalorder %v29, %v35
    %v38 = vsel %vm36, %v21, 0.0
    %v39 = vsel %vm37, %v22, 0.0
    %vm40 = vcmask 261120
    %v41 = vsel %vm40, %v38, 0.0
    %42 = vadd.xlane.f32.xlu0 %v41
    %v43 = vpop.xlane.xlu0 %42
    %v44 = vsel %vm40, %v39, 0.0
    %45 = vadd.xlane.f32.xlu0 %v44
    %v46 = vpop.xlane.xlu0 %45
    %v47 = vsel %vm40, %v21, -inf
    %48 = vmax.xlane.f32.xlu0 %v47
    %v49 = vpop.xlane.xlu0 %48
    %v50 = vsel %vm40, %v22, -inf
    %51 = vmax.xlane.f32.xlu0 %v50
    %v52 = vpop.xlane.xlu0 %51
    %v53 = vsub.f32 %v21, %v49
    %v54 = vsub.f32 %v22, %v52
    %v55 = vmul.f32 %v53, 1.442695
    %v56 = vpow.pop %v55
    %v57 = vmul.f32 %v54, 1.442695
    %v58 = vpow.pop %v57
    %v59 = vsel %vm40, %v56, 0.0
    %60 = vadd.xlane.f32.xlu0 %v59
    %v61 = vpop.xlane.xlu0 %60
    %v62 = vsel %vm40, %v58, 0.0
    %63 = vadd.xlane.f32.xlu0 %v62
    %v64 = vpop.xlane.xlu0 %63
    %v65 = vlog2.pop %v61
    %v66 = vmul.f32 %v65, 0.6931472
    %v67 = vlog2.pop %v64
    %v68 = vmul.f32 %v67, 0.6931472
    %v69 = vadd.f32 %v49, %v66
    %v70 = vadd.f32 %v52, %v68
    %v71 = vsub.f32 %v69, %v43
    %v72 = vsub.f32 %v70, %v46
    %v73 = vld [vmem:[#allocation2] sm:$0xff]
    %v74 = vld [vmem:[#allocation2 + $0x8] sm:$0xff]
    %v75 = vadd.f32 %v73, %v71
    %v76 = vadd.f32 %v74, %v72
    %vm77 = vcmask 7168
    %78 = vst.msk [vmem:[#allocation2] sm:$0xff] %vm77, %v75
    %79 = vst.msk [vmem:[#allocation2 + $0x8] sm:$0xff] %vm77, %v76
    // Predicated region
    $region14: #{tpu_custom_call.1} parent=1 // pred_check
      _
    $region15: #{tpu_custom_call.1} parent=1 // pred_check_branch
      %81 = sbr.rel (%p14) target = $region17
    $region16: #{tpu_custom_call.1} parent=1 // pred_region
      %v82 = vld [vmem:[#allocation2] sm:$0xff]
      %v83 = vld [vmem:[#allocation2 + $0x8] sm:$0xff]
      %v84 = vsel %vm77, %v82, 0.0
      %v85 = vsel %vm77, %v83, 0.0
      %v86 = vadd.f32 %v84, %v85
      %87 = vadd.xlane.f32.xlu0 %v86
      %v88 = vpop.xlane.xlu0 %87
      %v89 = vrot.slane %v88, 4
      %v90 = vadd.f32 %v88, %v89
      %v91 = vrot.slane %v90, 2
      %v92 = vadd.f32 %v90, %v91
      %v93 = vrot.slane %v92, 1
      %v94 = vadd.f32 %v92, %v93
      %s95 = vtos %v94
      %v96 = vstv %s95
      %v97 = vmul.f32 %v96, 0.0625
      %v98 = vsub.f32 0.0, %v97
      %v99 = vmul.f32 %v98, 1.442695
      %v100 = vpow.pop %v99
      %v101 = vsub.f32 1.0, %v100
      %v102 = vmax.f32 %v101, 0.0
      %v103 = vmul.f32 %v102, %v102
      %v104 = vmul.f32 %v103, %v97
      %vm105 = vcmask 0
      %106 = vst.msk [vmem:[#allocation3] sm:$0x1] %vm105, %v104
    $region17: #{tpu_custom_call.1} parent=1 // pred_fallthru
      _
    // Predicated region
    $region18: #{tpu_custom_call.1} parent=1 // pred_check
      _
    $region19: #{tpu_custom_call.1} parent=1 // pred_check_branch
      %108 = sbr.rel (0) target = $region21
    $region20: #{tpu_custom_call.1} parent=1 // pred_region
      %110 = vsyncadd [#allocation4], 0
      %s112 = sshll.u32 [#allocation3], 4
      %s113 = int_to_ptr.vmem [resolvable:$true] %s112
      %s114 = sshll.u32 %s2, 4
      %s115 = int_to_ptr.hbm [resolvable:$true] %s114
      %117 = dma.vmem_to_hbm [thread:$0]  %s113, 16, %s115, [#allocation4]
    $region21: #{tpu_custom_call.1} parent=1 // pred_fallthru
      _
    // Predicated region
    $region22: #{tpu_custom_call.1} parent=1 // pred_check
      _
    $region23: #{tpu_custom_call.1} parent=1 // pred_check_branch
      %119 = sbr.rel (0) target = $region25
    $region24: #{tpu_custom_call.1} parent=1 // pred_region
      %121 = dma.done [#allocation4], 16
    $region25: #{tpu_custom_call.1} parent=1 // pred_fallthru
      _
    %122 = vsyncpa [#allocation4], 1

</llo_original>
